<compile_context>
chip_gen: v6e
topology: v6e:2x2x1
jax: 0.10.0
libtpu: 0.0.40
codegen_flags: <defaults>
</compile_context>

<pallas_src>
import math

import numpy as np

import jax
import jax.numpy as jnp
from jax.experimental import pallas as pl
from jax.experimental.pallas import tpu as pltpu

_INV_SQRT3 = 1.0 / math.sqrt(3.0)
_LANES = 128
_VMEM_LIMIT_BYTES = 32 * 1024 * 1024   # raise v5e's 16 MiB default; fits v6e/v7x
_VMEM_WORK_BUDGET = 20 * 1024 * 1024   # padded working-set target (headroom left)


def _round_up(v, m):
    return (v + m - 1) // m * m


def _sublane(itemsize):
    # f32 -> 8 rows/vreg, bf16 -> 16, int8/fp8 -> 32
    return max(8, 32 // max(1, itemsize))


def _largest_fold(rows, width):
    """Largest G with G*width <= 128 lanes and rows % G == 0."""
    gmax = max(1, _LANES // max(1, width))
    for g in range(min(gmax, rows), 0, -1):
        if rows % g == 0:
            return g
    return 1


def _choose_tile_rows(rows, padded_bytes_per_row, sublane, budget_bytes):
    """Largest sublane-multiple row tile whose padded working set fits the
    budget, guaranteeing >= 2 grid steps (v7x megacore) whenever possible."""
    t = (budget_bytes // max(1, padded_bytes_per_row)) // sublane * sublane
    t = max(sublane, t)
    if t >= rows:
        if rows > sublane:
            # Split ~in half so dimension_semantics=("parallel",) can shard the
            # row tiles across both TensorCores on v7x.
            t = min(rows, _round_up((rows + 1) // 2, sublane))
        else:
            t = rows
    return min(t, rows)


def _similar_fold_kernel(t_ref, seg_ref, x_ref, o_ref):
    # t_ref: (1, GW) f32 target (resident), seg_ref: (GW, G) f32 segment matrix
    # (resident), x_ref: (tile_r, GW) lane-dense rows, o_ref: (tile_r, G).
    x = x_ref[...].astype(jnp.float32)
    d = x - t_ref[...]                                   # broadcast over rows
    d2 = d * d
    # Segmented lane reduction on the idle MXU: (tile_r, GW) @ (GW, G).
    s = jnp.dot(d2, seg_ref[...], preferred_element_type=jnp.float32)
    o_ref[...] = (1.0 - s * _INV_SQRT3).astype(o_ref.dtype)


def _similar_wide_kernel(t_ref, x_ref, o_ref):
    # Wide-W path (W >= 128 or no valid fold): output traffic is <= 1/128 of
    # input traffic, so the narrow (tile_r, 1) store is not a bottleneck.
    x = x_ref[...].astype(jnp.float32)
    d = x - t_ref[...]
    s = jnp.sum(d * d, axis=-1, keepdims=True)           # XLU lane reduce
    o_ref[...] = (1.0 - s * _INV_SQRT3).astype(o_ref.dtype)


def similar_forward(x, target):
    """1.0 - sum((x - target)^2, axis=-1, keepdims=True) / sqrt(3) via Pallas."""
    *lead, W = x.shape
    R = 1
    for d in lead:
        R *= int(d)

    # Module casts target to float32; only targets that broadcast along the
    # last (W) dim are supported.
    # TODO(synk): full-shape targets (broadcasting over non-last dims) would
    # need the target streamed alongside x; raise instead of silently mis-computing.
    t = jnp.asarray(target, dtype=jnp.float32)
    if t.ndim > 1 and any(int(d) != 1 for d in t.shape[:-1]):
        raise NotImplementedError(
            "similar_forward: target must broadcast along the last dim only")
    tvec = jnp.broadcast_to(t.reshape(-1) if t.ndim else t, (W,))

    out_dtype = jnp.promote_types(x.dtype, jnp.float32)
    x_itemsize = jnp.dtype(x.dtype).itemsize
    out_itemsize = jnp.dtype(out_dtype).itemsize
    sub = _sublane(x_itemsize)

    G = _largest_fold(R, W) if W < _LANES else 1

    if G > 1:
        # ---- lane-dense folded path (small W) ----
        Rf, GW = R // G, G * W
        x2d = x.reshape(Rf, GW)                      # free reshape of contiguous input
        t2d = jnp.tile(tvec, (G,)).reshape(1, GW)
        # (GW, G) segment-sum matrix: seg[i, j] = 1 iff i // W == j.
        seg = jnp.asarray(
            np.kron(np.eye(G, dtype=np.float32), np.ones((W, 1), np.float32)))

        padded_lanes = _round_up(GW, _LANES)
        # 2x double-buffered native-dtype input + ~3 f32 temporaries in VMEM.
        bytes_per_row = padded_lanes * (2 * x_itemsize + 3 * 4)
        tile_r = _choose_tile_rows(Rf, bytes_per_row, sub, _VMEM_WORK_BUDGET)
        grid = (pl.cdiv(Rf, tile_r),)

        out2d = pl.pallas_call(
            _similar_fold_kernel,
            out_shape=jax.ShapeDtypeStruct((Rf, G), out_dtype),
            grid_spec=pltpu.PrefetchScalarGridSpec(
                num_scalar_prefetch=0,
                grid=grid,
                in_specs=[
                    pl.BlockSpec((1, GW), lambda i: (0, 0)),        # target (resident)
                    pl.BlockSpec((GW, G), lambda i: (0, 0)),        # segment matrix
                    pl.BlockSpec((tile_r, GW), lambda i: (i, 0)),   # x row tile
                ],
                out_specs=pl.BlockSpec((tile_r, G), lambda i: (i, 0)),
            ),
            compiler_params=pltpu.CompilerParams(
                dimension_semantics=("parallel",),
                vmem_limit_bytes=_VMEM_LIMIT_BYTES,
            ),
            cost_estimate=pl.CostEstimate(
                flops=3 * R * W + 2 * R + 2 * Rf * GW * G,
                transcendentals=0,
                bytes_accessed=R * W * x_itemsize + GW * 4 + GW * G * 4
                + R * out_itemsize,
            ),
        )(t2d, seg, x2d)
        return out2d.reshape(*lead, 1)

    # ---- wide path (W >= 128, or R has no usable fold divisor) ----
    x2d = x.reshape(R, W)
    t2d = tvec.reshape(1, W)

    padded_lanes = _round_up(W, _LANES)
    bytes_per_row = padded_lanes * (2 * x_itemsize + 3 * 4)
    tile_r = _choose_tile_rows(R, bytes_per_row, sub, _VMEM_WORK_BUDGET)
    grid = (pl.cdiv(R, tile_r),)

    out2d = pl.pallas_call(
        _similar_wide_kernel,
        out_shape=jax.ShapeDtypeStruct((R, 1), out_dtype),
        grid_spec=pltpu.PrefetchScalarGridSpec(
            num_scalar_prefetch=0,
            grid=grid,
            in_specs=[
                pl.BlockSpec((1, W), lambda i: (0, 0)),         # target (resident)
                pl.BlockSpec((tile_r, W), lambda i: (i, 0)),    # x row tile
            ],
            out_specs=pl.BlockSpec((tile_r, 1), lambda i: (i, 0)),
        ),
        compiler_params=pltpu.CompilerParams(
            dimension_semantics=("parallel",),
            vmem_limit_bytes=_VMEM_LIMIT_BYTES,
        ),
        cost_estimate=pl.CostEstimate(
            flops=3 * R * W + 2 * R,
            transcendentals=0,
            bytes_accessed=R * W * x_itemsize + W * 4 + R * out_itemsize,
        ),
    )(t2d, x2d)
    return out2d.reshape(*lead, 1)


if __name__ == "__main__":
    key = jax.random.PRNGKey(0)
    kx, kt = jax.random.split(key)

    # NCHW input; reduction runs over the last (W) dim.
    x = jax.random.normal(kx, (2, 4, 16, 16), dtype=jnp.float32)
    target = jax.random.normal(kt, (16,), dtype=jnp.float32)

    out = jax.block_until_ready(similar_forward(x, target))

    # Reference in plain JAX (matches the PyTorch module's forward).
    ref = 1.0 - jnp.sum((x - target) ** 2, axis=-1, keepdims=True) / (3.0 ** 0.5)
    assert out.shape == (2, 4, 16, 1), out.shape
    assert jnp.allclose(out, ref, atol=1e-4, rtol=1e-5), "mismatch vs reference"

    print("KERNEL_OK")
</pallas_src>

<mosaic_0001>
module attributes {stable_mosaic.version = 11 : i64} {
  func.func @_similar_fold_kernel(%arg0: i32, %arg1: memref<1x128xf32, #tpu.memory_space<vmem>>, %arg2: memref<128x8xf32, #tpu.memory_space<vmem>>, %arg3: memref<8x128xf32, #tpu.memory_space<vmem>>, %arg4: memref<8x8xf32, #tpu.memory_space<vmem>>) attributes {dimension_semantics = [#tpu.dimension_semantics<parallel>], iteration_bounds = array<i64: 2>, scalar_prefetch = 0 : i64, scratch_operands = 0 : i64, tpu.core_type = #tpu.core_type<tc>, window_params = [{pipeline_mode = #tpu.pipeline_mode<synchronous>, transform_indices = @transform_0, window_bounds = array<i64: 1, 128>}, {pipeline_mode = #tpu.pipeline_mode<synchronous>, transform_indices = @transform_1, window_bounds = array<i64: 128, 8>}, {transform_indices = @transform_2, window_bounds = array<i64: 8, 128>}, {transform_indices = @transform_3, window_bounds = array<i64: 8, 8>}]} {
    %c0 = arith.constant 0 : index
    %c0_0 = arith.constant 0 : index
    %0 = vector.load %arg3[%c0, %c0_0] : memref<8x128xf32, #tpu.memory_space<vmem>>, vector<8x128xf32>
    %c0_1 = arith.constant 0 : index
    %c0_2 = arith.constant 0 : index
    %1 = vector.load %arg1[%c0_1, %c0_2] : memref<1x128xf32, #tpu.memory_space<vmem>>, vector<1x128xf32>
    %2 = vector.broadcast %1 : vector<1x128xf32> to vector<8x128xf32>
    %3 = arith.subf %0, %2 : vector<8x128xf32>
    %4 = arith.mulf %3, %3 : vector<8x128xf32>
    %c0_3 = arith.constant 0 : index
    %c0_4 = arith.constant 0 : index
    %5 = vector.load %arg2[%c0_3, %c0_4] : memref<128x8xf32, #tpu.memory_space<vmem>>, vector<128x8xf32>
    %cst = arith.constant dense<0.000000e+00> : vector<8x8xf32>
    %6 = tpu.matmul %4, %5, %cst {dimension_numbers = #tpu.dot_dimension_numbers<[1], [0], [0], [1], [0, 0, 1, 1], [], []>} : vector<8x128xf32>, vector<128x8xf32>, vector<8x8xf32> -> vector<8x8xf32>
    %cst_5 = arith.constant 0.577350259 : f32
    %7 = vector.broadcast %cst_5 : f32 to vector<8x8xf32>
    %8 = arith.mulf %6, %7 : vector<8x8xf32>
    %cst_6 = arith.constant 1.000000e+00 : f32
    %9 = vector.broadcast %cst_6 : f32 to vector<8x8xf32>
    %10 = arith.subf %9, %8 : vector<8x8xf32>
    %c0_7 = arith.constant 0 : index
    %c0_8 = arith.constant 0 : index
    %11 = vector.load %arg4[%c0_7, %c0_8] : memref<8x8xf32, #tpu.memory_space<vmem>>, vector<8x8xf32>
    tpu.vector_store %arg4[%c0_7, %c0_8], %10 {strides = array<i32>} : memref<8x8xf32, #tpu.memory_space<vmem>>, vector<8x8xf32>,
    return
  }
  func.func @transform_0(%arg0: i32) -> (i32, i32) {
    %c0_i32 = arith.constant 0 : i32
    %c0_i32_0 = arith.constant 0 : i32
    %c0_i32_1 = arith.constant 0 : i32
    return %c0_i32, %c0_i32_0 : i32, i32
  }
  func.func @transform_1(%arg0: i32) -> (i32, i32) {
    %c0_i32 = arith.constant 0 : i32
    %c0_i32_0 = arith.constant 0 : i32
    %c0_i32_1 = arith.constant 0 : i32
    return %c0_i32, %c0_i32_0 : i32, i32
  }
  func.func @transform_2(%arg0: i32) -> (i32, i32) {
    %c0_i32 = arith.constant 0 : i32
    %c0_i32_0 = arith.constant 0 : i32
    return %arg0, %c0_i32 : i32, i32
  }
  func.func @transform_3(%arg0: i32) -> (i32, i32) {
    %c0_i32 = arith.constant 0 : i32
    %c0_i32_0 = arith.constant 0 : i32
    return %arg0, %c0_i32 : i32, i32
  }
}

</mosaic_0001>

<llo_original>
// kernel: tpu_custom_call.1
$region0: #{tpu_custom_call.1}
  #allocation0 [shape = 'u32[]', space=smem, size = 0x4, offset = 0x4, fixed_abs, tag = 'smem constant byte address 0x4 - core index']
  #allocation1 [shape = 'u32[144,128]{1,0:T(1,128)}', space=vmem, size = 0x12000, scoped, tag = 'internal scratch']
  %s0 = inlined_call_operand.vmem [shape: f32[1,128], index: 0, kind: input, shape index: {}]
  %s1 = inlined_call_operand.vmem [shape: f32[128,8], index: 1, kind: input, shape index: {}]
  %s2 = inlined_call_operand.vmem [shape: f32[16,128], index: 2, kind: input, shape index: {}]
  %s3 = inlined_call_operand.vmem [shape: f32[16,8], index: 3, kind: output, shape index: {}]
  %s4 = sld [smem:[#allocation0]]
  $region45: #{tpu_custom_call.1} parent=0
    _
  %s6 = ssub.s32 1, %s4
  %s7 = scalar_select 0, %s6, %s4
  loop: start=0, step=1, limit=4
  $region2: #{tpu_custom_call.1} parent=0 // loop_pre_header
    _
  $region3: #{tpu_custom_call.1} parent=0 // loop_header
    %s9 = sphi 0, %s13
    %p10 = scmp.ge.s32.totalorder %s9, 4
    %s17 = sphi 0, %s17
    %s19 = sphi 0, %s17
    %s20 = sphi 0, %s19
    %s34 = sphi 0, %s20
    %s38 = sphi 0, %s38
    %s40 = sphi 0, %s38
    %s41 = sphi 0, %s40
    %s55 = sphi 0, %s41
    %s61 = sphi 0, %s63
    %s64 = sphi 0, %s61
    %s65 = sphi 0, %s64
    %s81 = sphi 0, %s65
    %s87 = sphi 0, %s89
    %s90 = sphi 0, %s87
    %s91 = sphi 0, %s90
    %s107 = sphi 0, %s91
  $region4: #{tpu_custom_call.1} parent=0 // loop_header_branch
    %12 = sbr.rel (%p10) target = $region8
  $region5: #{tpu_custom_call.1} parent=0 // loop_body
    %s14 = ssub.s32 %s9, 1
    %s15 = ssub.s32 %s9, 2
    %s16 = sadd.s32 %s9, 1
    %s18 = sadd.s32 %s17, 1
    %p21 = scmp.eq.s32.totalorder %s9, 1
    %p22 = scmp.ne.s32.totalorder %s17, %s19
    %p23 = scmp.eq.s32.totalorder %s9, 0
    %p24 = por %p22, %p23
    %p25 = scmp.ne.s32.totalorder %s17, %s19
    %p26 = scmp.eq.s32.totalorder %s14, 1
    %p27 = por %p25, %p26
    %p28 = scmp.ne.s32.totalorder %s19, %s20
    %p29 = scmp.eq.s32.totalorder %s14, 0
    %p30 = por %p28, %p29
    %p31 = scmp.ne.s32.totalorder %s19, %s20
    %p32 = scmp.eq.s32.totalorder %s15, 1
    %p33 = por %p31, %p32
    %p35 = scmp.ne.s32.totalorder %s20, %s34
    %p36 = scmp.eq.s32.totalorder %s15, 0
    %p37 = por %p35, %p36
    %s39 = sadd.s32 %s38, 1
    %p42 = scmp.eq.s32.totalorder %s9, 1
    %p43 = scmp.ne.s32.totalorder %s38, %s40
    %p44 = scmp.eq.s32.totalorder %s9, 0
    %p45 = por %p43, %p44
    %p46 = scmp.ne.s32.totalorder %s38, %s40
    %p47 = scmp.eq.s32.totalorder %s14, 1
    %p48 = por %p46, %p47
    %p49 = scmp.ne.s32.totalorder %s40, %s41
    %p50 = scmp.eq.s32.totalorder %s14, 0
    %p51 = por %p49, %p50
    %p52 = scmp.ne.s32.totalorder %s40, %s41
    %p53 = scmp.eq.s32.totalorder %s15, 1
    %p54 = por %p52, %p53
    %p56 = scmp.ne.s32.totalorder %s41, %s55
    %p57 = scmp.eq.s32.totalorder %s15, 0
    %p58 = por %p56, %p57
    %s59 = ssub.s32 %s9, %s16
    %p60 = scmp.eq.s32.totalorder %s59, 0
    %s62 = sadd.s32 %s61, 1
    %s63 = scalar_select %p60, %s61, %s62
    %p66 = pneg %p60
    %p67 = scmp.eq.s32.totalorder %s9, 1
    %p68 = por %p66, %p67
    %p69 = scmp.ne.s32.totalorder %s61, %s64
    %p70 = scmp.eq.s32.totalorder %s9, 0
    %p71 = por %p69, %p70
    %p72 = scmp.ne.s32.totalorder %s61, %s64
    %p73 = scmp.eq.s32.totalorder %s14, 1
    %p74 = por %p72, %p73
    %p75 = scmp.ne.s32.totalorder %s64, %s65
    %p76 = scmp.eq.s32.totalorder %s14, 0
    %p77 = por %p75, %p76
    %p78 = scmp.ne.s32.totalorder %s64, %s65
    %p79 = scmp.eq.s32.totalorder %s15, 1
    %p80 = por %p78, %p79
    %p82 = scmp.ne.s32.totalorder %s65, %s81
    %p83 = scmp.eq.s32.totalorder %s15, 0
    %p84 = por %p82, %p83
    %s85 = ssub.s32 %s9, %s16
    %p86 = scmp.eq.s32.totalorder %s85, 0
    %s88 = sadd.s32 %s87, 1
    %s89 = scalar_select %p86, %s87, %s88
    %p92 = pneg %p86
    %p93 = scmp.eq.s32.totalorder %s9, 1
    %p94 = por %p92, %p93
    %p95 = scmp.ne.s32.totalorder %s87, %s90
    %p96 = scmp.eq.s32.totalorder %s9, 0
    %p97 = por %p95, %p96
    %p98 = scmp.ne.s32.totalorder %s87, %s90
    %p99 = scmp.eq.s32.totalorder %s14, 1
    %p100 = por %p98, %p99
    %p101 = scmp.ne.s32.totalorder %s90, %s91
    %p102 = scmp.eq.s32.totalorder %s14, 0
    %p103 = por %p101, %p102
    %p104 = scmp.ne.s32.totalorder %s90, %s91
    %p105 = scmp.eq.s32.totalorder %s15, 1
    %p106 = por %p104, %p105
    %p108 = scmp.ne.s32.totalorder %s91, %s107
    %p109 = scmp.eq.s32.totalorder %s15, 0
    %p110 = por %p108, %p109
    %p111 = scmp.le.s32.totalorder 1, %s9
    %p112 = scmp.lt.s32.totalorder %s9, 3
    %p113 = pnand %p111, %p112
    %p114 = pneg %p113
    // Predicated region
    $region9: #{tpu_custom_call.1} parent=5 // pred_check
      _
    $region10: #{tpu_custom_call.1} parent=5 // pred_check_branch
      %116 = sbr.rel (%p113) target = $region12
    $region11: #{tpu_custom_call.1} parent=5 // pred_region
      %s117 = ssub.s32 %s9, 1
      // Predicated region
      $region13: #{tpu_custom_call.1} parent=11 // pred_check
        %p118 = pneg %p30
      $region14: #{tpu_custom_call.1} parent=11 // pred_check_branch
        %120 = sbr.rel (%p118) target = $region16
      $region15: #{tpu_custom_call.1} parent=11 // pred_region
        _
      $region16: #{tpu_custom_call.1} parent=11 // pred_fallthru
        _
      // Predicated region
      $region17: #{tpu_custom_call.1} parent=11 // pred_check
        %p121 = pneg %p51
      $region18: #{tpu_custom_call.1} parent=11 // pred_check_branch
        %123 = sbr.rel (%p121) target = $region20
      $region19: #{tpu_custom_call.1} parent=11 // pred_region
        _
      $region20: #{tpu_custom_call.1} parent=11 // pred_fallthru
        _
    $region12: #{tpu_custom_call.1} parent=5 // pred_fallthru
      _
    %p124 = scmp.lt.s32.totalorder %s9, 2
    // Predicated region
    $region21: #{tpu_custom_call.1} parent=5 // pred_check
      %p125 = pneg %p124
    $region22: #{tpu_custom_call.1} parent=5 // pred_check_branch
      %127 = sbr.rel (%p125) target = $region24
    $region23: #{tpu_custom_call.1} parent=5 // pred_region
      // Predicated region
      $region25: #{tpu_custom_call.1} parent=23 // pred_check
        %p128 = pneg %p71
      $region26: #{tpu_custom_call.1} parent=23 // pred_check_branch
        %130 = sbr.rel (%p128) target = $region28
      $region27: #{tpu_custom_call.1} parent=23 // pred_region
        %p131 = scmp.lt.s32.totalorder %s9, 1
        %s132 = scalar_select %p131, %s9, 1
        %s133 = smul.addr %s132, 8
        %s134 = scalar_lea.vmem %s2, %s133
      $region28: #{tpu_custom_call.1} parent=23 // pred_fallthru
        _
    $region24: #{tpu_custom_call.1} parent=5 // pred_fallthru
      _
    %p135 = scmp.le.s32.totalorder 1, %s9
    %p136 = scmp.lt.s32.totalorder %s9, 3
    %p137 = pnand %p135, %p136
    %p138 = pneg %p137
    // Predicated region
    $region29: #{tpu_custom_call.1} parent=5 // pred_check
      _
    $region30: #{tpu_custom_call.1} parent=5 // pred_check_branch
      %140 = sbr.rel (%p137) target = $region32
    $region31: #{tpu_custom_call.1} parent=5 // pred_region
      %s141 = ssub.s32 %s9, 1
      %p142 = pneg %p30
      %p143 = pneg %p27
      %p144 = pneg %p51
      %p145 = pneg %p48
      %p146 = scmp.lt.s32.totalorder %s14, 1
      %s147 = scalar_select %p146, %s14, 1
      %s148 = smul.addr %s147, 8
      %s149 = scalar_lea.vmem %s2, %s148
      %p150 = pneg %p77
      %p151 = pneg %p74
      %p152 = pneg %p103
      %p153 = pneg %p100
      %p154 = scmp.lt.s32.totalorder %s14, 1
      %s155 = scalar_select %p154, %s14, 1
      %s156 = smul.addr %s155, 8
      %s157 = scalar_lea.vmem %s3, %s156
      %p158 = scmp.lt.s32.totalorder %s14, 1
      %s159 = scalar_select %p158, %s14, 1
      %s160 = smul.addr %s159, 8
      %s161 = scalar_lea.vmem %s2, %s160
      %p162 = scmp.lt.s32.totalorder %s14, 1
      %s163 = scalar_select %p162, %s14, 1
      %s164 = smul.addr %s163, 8
      %s165 = scalar_lea.vmem %s3, %s164
      %v166 = vld [vmem:[%s161] sm:$0xff]
      %v167 = vld [vmem:[%s0] sm:$0x1]
      %v169 = vlaneseq
      %v170 = vshrl.u32 %v169, 7
      %v171 = vsub.s32 0, %v170
      %v172 = vrot.slane %v167, %v171
      %v174 = vsub.f32 %v166, %v172
      %v175 = vmul.f32 %v174, %v174
      %v176 = vld [vmem:[%s1] sm:$0xff]
      %v177 = vld [vmem:[%s1 + $0x8] sm:$0xff]
      %v178 = vld [vmem:[%s1 + $0x10] sm:$0xff]
      %v179 = vld [vmem:[%s1 + $0x18] sm:$0xff]
      %v180 = vld [vmem:[%s1 + $0x20] sm:$0xff]
      %v181 = vld [vmem:[%s1 + $0x28] sm:$0xff]
      %v182 = vld [vmem:[%s1 + $0x30] sm:$0xff]
      %v183 = vld [vmem:[%s1 + $0x38] sm:$0xff]
      %v184 = vld [vmem:[%s1 + $0x40] sm:$0xff]
      %v185 = vld [vmem:[%s1 + $0x48] sm:$0xff]
      %v186 = vld [vmem:[%s1 + $0x50] sm:$0xff]
      %v187 = vld [vmem:[%s1 + $0x58] sm:$0xff]
      %v188 = vld [vmem:[%s1 + $0x60] sm:$0xff]
      %v189 = vld [vmem:[%s1 + $0x68] sm:$0xff]
      %v190 = vld [vmem:[%s1 + $0x70] sm:$0xff]
      %v191 = vld [vmem:[%s1 + $0x78] sm:$0xff]
      %192 = vmatprep.subr.mxu0 0.0
      %193 = vmatpush1.msra.mxu0 %v191
      %194 = vmatprep.subr.mxu0 0.0
      %195 = vmatpush1.msra.mxu0 %v190
      %196 = vmatprep.subr.mxu0 0.0
      %197 = vmatpush1.msra.mxu0 %v189
      %198 = vmatprep.subr.mxu0 0.0
      %199 = vmatpush1.msra.mxu0 %v188
      %200 = vmatprep.subr.mxu0 0.0
      %201 = vmatpush1.msra.mxu0 %v187
      %202 = vmatprep.subr.mxu0 0.0
      %203 = vmatpush1.msra.mxu0 %v186
      %204 = vmatprep.subr.mxu0 0.0
      %205 = vmatpush1.msra.mxu0 %v185
      %206 = vmatprep.subr.mxu0 0.0
      %207 = vmatpush1.msra.mxu0 %v184
      %208 = vmatprep.subr.mxu0 0.0
      %209 = vmatpush1.msra.mxu0 %v183
      %210 = vmatprep.subr.mxu0 0.0
      %211 = vmatpush1.msra.mxu0 %v182
      %212 = vmatprep.subr.mxu0 0.0
      %213 = vmatpush1.msra.mxu0 %v181
      %214 = vmatprep.subr.mxu0 0.0
      %215 = vmatpush1.msra.mxu0 %v180
      %216 = vmatprep.subr.mxu0 0.0
      %217 = vmatpush1.msra.mxu0 %v179
      %218 = vmatprep.subr.mxu0 0.0
      %219 = vmatpush1.msra.mxu0 %v178
      %220 = vmatprep.subr.mxu0 0.0
      %221 = vmatpush1.msra.mxu0 %v177
      %222 = vmatprep.subr.mxu0 0.0
      %223 = vmatpush1.msra.mxu0 %v176
      %224 = vmatprep.subr.mxu0 0.0
      %225 = vmatpush2.msra.mxu0 0.0
      %226 = vmatprep.subr.mxu0 0.0
      %227 = vmatpush2.msra.mxu0 0.0
      %228 = vmatprep.subr.mxu0 0.0
      %229 = vmatpush2.msra.mxu0 0.0
      %230 = vmatprep.subr.mxu0 0.0
      %231 = vmatpush2.msra.mxu0 0.0
      %232 = vmatprep.subr.mxu0 0.0
      %233 = vmatpush2.msra.mxu0 0.0
      %234 = vmatprep.subr.mxu0 0.0
      %235 = vmatpush2.msra.mxu0 0.0
      %236 = vmatprep.subr.mxu0 0.0
      %237 = vmatpush2.msra.mxu0 0.0
      %238 = vmatprep.subr.mxu0 0.0
      %239 = vmatpush2.msra.mxu0 0.0
      %240 = vmatprep.subr.mxu0 0.0
      %241 = vmatpush2.msra.mxu0 0.0
      %242 = vmatprep.subr.mxu0 0.0
      %243 = vmatpush2.msra.mxu0 0.0
      %244 = vmatprep.subr.mxu0 0.0
      %245 = vmatpush2.msra.mxu0 0.0
      %246 = vmatprep.subr.mxu0 0.0
      %247 = vmatpush2.msra.mxu0 0.0
      %248 = vmatprep.subr.mxu0 0.0
      %249 = vmatpush2.msra.mxu0 0.0
      %250 = vmatprep.subr.mxu0 0.0
      %251 = vmatpush2.msra.mxu0 0.0
      %252 = vmatprep.subr.mxu0 0.0
      %253 = vmatpush2.msra.mxu0 0.0
      %254 = vmatprep.subr.mxu0 0.0
      %255 = vmatpush2.msra.mxu0 0.0
      %256 = vmatprep.mubr.f32.mxu0 0.0
      %257 = vmatmul.mubr.f32.gmra.mxu0 %v175
      %v258 = vpop.f32.mrf.mxu0
      %v259 = vadd.f32 0.0, %v258
      %v260 = vpop.f32.mrf.mxu0
      %261 = vdwg.mxu0
      %v262 = vmul.f32 %v259, 0.57735026
      %v263 = vsub.f32 1.0, %v262
      %vm264 = vcmask 64512
      %265 = vst.msk [vmem:[%s165] sm:$0xff] %vm264, %v263
      %p266 = scmp.lt.s32.totalorder %s14, 1
      %s267 = scalar_select %p266, %s14, 1
      %s268 = smul.addr %s267, 8
      %s269 = scalar_lea.vmem %s3, %s268
      // Predicated region
      $region33: #{tpu_custom_call.1} parent=31 // pred_check
        %p270 = pneg %p100
      $region34: #{tpu_custom_call.1} parent=31 // pred_check_branch
        %272 = sbr.rel (%p270) target = $region36
      $region35: #{tpu_custom_call.1} parent=31 // pred_region
        _
      $region36: #{tpu_custom_call.1} parent=31 // pred_fallthru
        _
    $region32: #{tpu_custom_call.1} parent=5 // pred_fallthru
      _
    %p273 = scmp.le.s32.totalorder 2, %s9
    // Predicated region
    $region37: #{tpu_custom_call.1} parent=5 // pred_check
      %p274 = pneg %p273
    $region38: #{tpu_custom_call.1} parent=5 // pred_check_branch
      %276 = sbr.rel (%p274) target = $region40
    $region39: #{tpu_custom_call.1} parent=5 // pred_region
      %s277 = ssub.s32 %s9, 2
      // Predicated region
      $region41: #{tpu_custom_call.1} parent=39 // pred_check
        %p278 = pneg %p106
      $region42: #{tpu_custom_call.1} parent=39 // pred_check_branch
        %280 = sbr.rel (%p278) target = $region44
      $region43: #{tpu_custom_call.1} parent=39 // pred_region
        %p281 = scmp.lt.s32.totalorder %s15, 1
        %s282 = scalar_select %p281, %s15, 1
        %s283 = smul.addr %s282, 8
        %s284 = scalar_lea.vmem %s3, %s283
      $region44: #{tpu_custom_call.1} parent=39 // pred_fallthru
        _
    $region40: #{tpu_custom_call.1} parent=5 // pred_fallthru
      _
  $region6: #{tpu_custom_call.1} parent=0 // loop_footer
    %s13 = sadd.s32 1, %s9
  $region7: #{tpu_custom_call.1} parent=0 // loop_footer_branch
    %8 = sbr.rel target = $region3
  $region8: #{tpu_custom_call.1} parent=0 // loop_exit
    _

</llo_original>
